<compile_context>
chip_gen: v6e
topology: v6e:2x2x1
jax: 0.10.0
libtpu: 0.0.40
codegen_flags: <defaults>
</compile_context>

<pallas_src>
import functools
import math

import jax
import jax.numpy as jnp
from jax.experimental import pallas as pl
from jax.experimental.pallas import tpu as pltpu

LN_EPS = 1e-12                      # matches the reference LayerNorm
COMPUTE_DTYPE = jnp.bfloat16        # jnp.float32 for bit-accurate comparison
APPROX_RECIPROCAL = True            # EUP vrcp for softmax denominator

# tile targets (multiples of 256 feed the v6e/v7x MXU well; bf16 tiles keep
# the double-buffered working set small on every generation)
_TM, _TN, _TK = 256, 512, 512


def _pick(dim, target, align):
    """Largest divisor of `dim` that is <= target and a multiple of `align`.

    Falls back to the full dim (always a legal block shape) only if no
    aligned divisor exists.
    """
    if dim <= target:
        return dim
    t = (target // align) * align
    while t >= align:
        if dim % t == 0:
            return t
        t -= align
    return dim


def _vmem_limit(est_bytes):
    """Scoped-VMEM limit from an estimated working set (2x margin, 64MiB cap
    so it is valid on v7x; v5e/v6e have >=128MiB physical)."""
    return int(min(max(2 * est_bytes + (4 << 20), 32 << 20), 64 << 20))


# ---------------------------------------------------------------- kernels ---

def _linear_kernel(x_ref, w_ref, b_ref, o_ref, acc_ref, *, relu):
    k = pl.program_id(2)

    @pl.when(k == 0)
    def _():
        acc_ref[...] = jnp.zeros_like(acc_ref)

    acc_ref[...] += jnp.dot(x_ref[...], w_ref[...],
                            preferred_element_type=jnp.float32)

    @pl.when(k == pl.num_programs(2) - 1)
    def _():
        y = acc_ref[...] + b_ref[...].astype(jnp.float32)
        if relu:
            y = jnp.maximum(y, 0.0)
        o_ref[...] = y.astype(o_ref.dtype)


def _linear_add_ln_kernel(x_ref, w_ref, b_ref, r_ref, g_ref, bt_ref,
                          o_ref, acc_ref):
    # matmul + bias + residual add + LayerNorm fused epilogue.
    k = pl.program_id(1)

    @pl.when(k == 0)
    def _():
        acc_ref[...] = jnp.zeros_like(acc_ref)

    acc_ref[...] += jnp.dot(x_ref[...], w_ref[...],
                            preferred_element_type=jnp.float32)

    @pl.when(k == pl.num_programs(1) - 1)
    def _():
        y = acc_ref[...] + b_ref[...].astype(jnp.float32)
        y = y + r_ref[...].astype(jnp.float32)
        mean = jnp.mean(y, axis=-1, keepdims=True)
        var = jnp.mean((y - mean) ** 2, axis=-1, keepdims=True)
        yn = (y - mean) * jax.lax.rsqrt(var + LN_EPS)
        o_ref[...] = (yn * g_ref[...].astype(jnp.float32)
                      + bt_ref[...].astype(jnp.float32)).astype(o_ref.dtype)


def _attn_kernel(q_ref, k_ref, v_ref, m_ref, o_ref,
                 acc_sc, m_sc, l_sc, *, n_head):
    # Flash-style attention over Sk tiles.
    # Blocks: q (1, tq, D), k/v (1, tk, D), mask (1, 1, tq, tk), out (1, tq, D).
    # Scratch: acc (H, tq, Dh), m/l (H, tq, 1) - running online-softmax state.
    j = pl.program_id(2)

    @pl.when(j == 0)
    def _():
        m_sc[...] = jnp.full(m_sc.shape, -jnp.inf, dtype=jnp.float32)
        l_sc[...] = jnp.zeros(l_sc.shape, dtype=jnp.float32)
        acc_sc[...] = jnp.zeros(acc_sc.shape, dtype=jnp.float32)

    D = q_ref.shape[-1]
    Dh = D // n_head
    scale = 1.0 / math.sqrt(Dh)

    # hoisted out of the head loop: additive mask bias and softmax scale
    neg_bias = jnp.where(m_ref[0, 0] == 0, -10000.0, 0.0)     # (tq, tk) f32
    q = q_ref[0] * scale                                       # (tq, D), in dtype
    k = k_ref[0]
    v = v_ref[0]

    # TODO(synk): if Dh < 128, pairing heads per 128-lane slab (batched
    # dot_general) would avoid sub-128 lane slices and underfilled MXU depth.
    for h in range(n_head):                                    # static unroll
        lo = h * Dh
        qh = q[:, lo:lo + Dh]
        kh = k[:, lo:lo + Dh]
        vh = v[:, lo:lo + Dh]
        # scores (tq, tk): contract last dims directly (no k.T / XLU transpose)
        s = jax.lax.dot_general(qh, kh, (((1,), (1,)), ((), ())),
                                preferred_element_type=jnp.float32)
        s = s + neg_bias
        m_prev = m_sc[h]                                       # (tq, 1)
        m_new = jnp.maximum(m_prev, jnp.max(s, axis=-1, keepdims=True))
        alpha = jnp.exp(m_prev - m_new)
        p = jnp.exp(s - m_new)
        l_sc[h] = alpha * l_sc[h] + jnp.sum(p, axis=-1, keepdims=True)
        acc_sc[h] = alpha * acc_sc[h] + jnp.dot(
            p.astype(vh.dtype), vh, preferred_element_type=jnp.float32)
        m_sc[h] = m_new

    @pl.when(j == pl.num_programs(2) - 1)
    def _():
        for h in range(n_head):                                # stream per head
            lo = h * Dh
            inv_l = pl.reciprocal(l_sc[h], approx=APPROX_RECIPROCAL)
            o_ref[0, :, lo:lo + Dh] = (acc_sc[h] * inv_l).astype(o_ref.dtype)


# --------------------------------------------------------------- wrappers ---

def linear(x2d, w, b, relu=False):
    M, K = x2d.shape
    N = w.shape[1]
    tm = _pick(M, _TM, 8)
    tn = _pick(N, _TN, 128)
    tk = _pick(K, _TK, 128)
    est = (2 * (tm * tk * x2d.dtype.itemsize
                + tk * tn * w.dtype.itemsize
                + tn * 4
                + tm * tn * x2d.dtype.itemsize)
           + tm * tn * 4)
    kern = functools.partial(_linear_kernel, relu=relu)
    return pl.pallas_call(
        kern,
        out_shape=jax.ShapeDtypeStruct((M, N), x2d.dtype),
        grid=(M // tm, N // tn, K // tk),
        in_specs=[pl.BlockSpec((tm, tk), lambda i, j, k: (i, k)),
                  pl.BlockSpec((tk, tn), lambda i, j, k: (k, j)),
                  pl.BlockSpec((1, tn), lambda i, j, k: (0, j))],
        out_specs=pl.BlockSpec((tm, tn), lambda i, j, k: (i, j)),
        scratch_shapes=[pltpu.VMEM((tm, tn), jnp.float32)],
        compiler_params=pltpu.CompilerParams(
            dimension_semantics=("parallel", "parallel", "arbitrary"),
            vmem_limit_bytes=_vmem_limit(est)),
    )(x2d, w, b.reshape(1, N))


def linear_add_ln(x2d, w, b, res2d, gamma, beta):
    # y = LayerNorm(x2d @ w + b + res2d); N (= d_model) kept whole so the
    # LayerNorm row statistics are available in the epilogue.
    M, K = x2d.shape
    N = w.shape[1]
    tm = _pick(M, _TM, 8)
    tk = _pick(K, _TK, 128)
    est = (2 * (tm * tk * x2d.dtype.itemsize + tk * N * w.dtype.itemsize)
           + 6 * N * 4                           # bias, gamma, beta (f32)
           + 2 * tm * N * res2d.dtype.itemsize   # residual
           + 2 * tm * N * x2d.dtype.itemsize     # output
           + tm * N * 4)                         # f32 accumulator
    return pl.pallas_call(
        _linear_add_ln_kernel,
        out_shape=jax.ShapeDtypeStruct((M, N), x2d.dtype),
        grid=(M // tm, K // tk),
        in_specs=[pl.BlockSpec((tm, tk), lambda i, k: (i, k)),
                  pl.BlockSpec((tk, N), lambda i, k: (k, 0)),
                  pl.BlockSpec((1, N), lambda i, k: (0, 0)),
                  pl.BlockSpec((tm, N), lambda i, k: (i, 0)),
                  pl.BlockSpec((1, N), lambda i, k: (0, 0)),
                  pl.BlockSpec((1, N), lambda i, k: (0, 0))],
        out_specs=pl.BlockSpec((tm, N), lambda i, k: (i, 0)),
        scratch_shapes=[pltpu.VMEM((tm, N), jnp.float32)],
        compiler_params=pltpu.CompilerParams(
            dimension_semantics=("parallel", "arbitrary"),
            vmem_limit_bytes=_vmem_limit(est)),
    )(x2d, w, b.reshape(1, N), res2d, gamma.reshape(1, N), beta.reshape(1, N))


def attention(q_arr, k_arr, v_arr, mask, n_head, d_model,
              q_col=0, k_col=0, v_col=0):
    # q_arr: (B, Sq, *), k_arr/v_arr: (B, Sk, *), mask: (B, 1, Sq, Sk) int8.
    # *_col are D-column block offsets into the (possibly fused) projections,
    # so fused QKV / KV outputs are consumed without XLA slice copies.
    B, Sq = q_arr.shape[0], q_arr.shape[1]
    Sk = k_arr.shape[1]
    D = d_model
    Dh = D // n_head
    tq = _pick(Sq, 256, 8)
    tk = _pick(Sk, 512, 128)
    est = (2 * (tq * D + 2 * tk * D) * q_arr.dtype.itemsize      # q, k, v
           + 2 * tq * tk * mask.dtype.itemsize                   # int8 mask
           + 2 * tq * D * q_arr.dtype.itemsize                   # output
           + n_head * tq * (max(Dh, 128) + 2 * 128) * 4)         # scratch
    kern = functools.partial(_attn_kernel, n_head=n_head)
    return pl.pallas_call(
        kern,
        out_shape=jax.ShapeDtypeStruct((B, Sq, D), q_arr.dtype),
        grid=(B, Sq // tq, Sk // tk),
        in_specs=[
            pl.BlockSpec((1, tq, D), lambda b, i, j, c=q_col: (b, i, c)),
            pl.BlockSpec((1, tk, D), lambda b, i, j, c=k_col: (b, j, c)),
            pl.BlockSpec((1, tk, D), lambda b, i, j, c=v_col: (b, j, c)),
            pl.BlockSpec((1, 1, tq, tk), lambda b, i, j: (b, 0, i, j)),
        ],
        out_specs=pl.BlockSpec((1, tq, D), lambda b, i, j: (b, i, 0)),
        scratch_shapes=[pltpu.VMEM((n_head, tq, Dh), jnp.float32),
                        pltpu.VMEM((n_head, tq, 1), jnp.float32),
                        pltpu.VMEM((n_head, tq, 1), jnp.float32)],
        compiler_params=pltpu.CompilerParams(
            dimension_semantics=("parallel", "parallel", "arbitrary"),
            vmem_limit_bytes=_vmem_limit(est)),
    )(q_arr, k_arr, v_arr, mask)


# ----------------------------------------------------------- decoder stack --

def decoder_layer(dec, enc, tgt_mask, src_mask, p, n_head):
    B, S, D = dec.shape
    dec2d = dec.reshape(B * S, D)
    aligned = (D % 128 == 0)

    # ---- self attention (fused QKV) + add & LayerNorm (fused epilogue) ----
    sa = p["self_attn"]
    qkv = linear(dec2d, sa["wqkv"], sa["bqkv"])                  # (B*S, 3D)
    if aligned:
        qkv3 = qkv.reshape(B, S, 3 * D)
        a = attention(qkv3, qkv3, qkv3, tgt_mask, n_head, D, 0, 1, 2)
    else:
        # TODO(synk): d_model not a multiple of 128 -> BlockSpec column offsets
        # into the fused projection are not tile-aligned; fall back to XLA
        # slices (only hit for toy shapes).
        q = qkv[:, :D].reshape(B, S, D)
        k = qkv[:, D:2 * D].reshape(B, S, D)
        v = qkv[:, 2 * D:].reshape(B, S, D)
        a = attention(q, k, v, tgt_mask, n_head, D, 0, 0, 0)
    x2d = linear_add_ln(a.reshape(B * S, D), sa["wo"], sa["bo"],
                        dec2d, p["ln1_g"], p["ln1_b"])

    # ---- encoder-decoder attention (fused KV) + add & LayerNorm ----
    if enc is not None:
        Be, Se, _ = enc.shape
        ca = p["cross_attn"]
        enc2d = enc.reshape(Be * Se, D)
        q2d = linear(x2d, ca["wq"], ca["bq"])                    # (B*S, D)
        kv = linear(enc2d, ca["wkv"], ca["bkv"])                 # (Be*Se, 2D)
        if aligned:
            q3 = q2d.reshape(B, S, D)
            kv3 = kv.reshape(Be, Se, 2 * D)
            a = attention(q3, kv3, kv3, src_mask, n_head, D, 0, 0, 1)
        else:
            q = q2d.reshape(B, S, D)
            k = kv[:, :D].reshape(Be, Se, D)
            v = kv[:, D:].reshape(Be, Se, D)
            a = attention(q, k, v, src_mask, n_head, D, 0, 0, 0)
        x2d = linear_add_ln(a.reshape(B * S, D), ca["wo"], ca["bo"],
                            x2d, p["ln2_g"], p["ln2_b"])

    # ---- position-wise FFN + add & LayerNorm (dropout = identity) ----
    h = linear(x2d, p["ffn_w1"], p["ffn_b1"], relu=True)
    x2d = linear_add_ln(h, p["ffn_w2"], p["ffn_b2"],
                        x2d, p["ln3_g"], p["ln3_b"])
    return x2d.reshape(B, S, D)


def _cast_layer_params(p):
    """Weight matrices -> COMPUTE_DTYPE; biases and LN params stay f32
    (added / applied in the f32 epilogue)."""
    def cast_w(d):
        return {k: (v.astype(COMPUTE_DTYPE) if k.startswith("w") else v)
                for k, v in d.items()}
    out = dict(p)
    out["self_attn"] = cast_w(p["self_attn"])
    out["cross_attn"] = cast_w(p["cross_attn"])
    out["ffn_w1"] = p["ffn_w1"].astype(COMPUTE_DTYPE)
    out["ffn_w2"] = p["ffn_w2"].astype(COMPUTE_DTYPE)
    return out


def decoder_forward(tgt, enc_src, tgt_mask, src_mask, params, n_head):
    x = tgt.astype(COMPUTE_DTYPE)
    enc = None if enc_src is None else enc_src.astype(COMPUTE_DTYPE)
    tmask = tgt_mask.astype(jnp.int8)                 # 4x less mask DMA vs f32
    smask = None if src_mask is None else src_mask.astype(jnp.int8)
    for p in params:
        x = decoder_layer(x, enc, tmask, smask, _cast_layer_params(p), n_head)
    return x.astype(tgt.dtype)


# --------------------------------------------------------------- params -----

def _lin_init(key, d_in, d_out):
    w = jax.random.normal(key, (d_in, d_out), jnp.float32) * 0.02
    b = jnp.zeros((d_out,), jnp.float32)
    return w, b


def init_layer_params(key, d_model, ffn_hidden):
    ks = jax.random.split(key, 10)

    wq, bq = _lin_init(ks[0], d_model, d_model)
    wk, bk = _lin_init(ks[1], d_model, d_model)
    wv, bv = _lin_init(ks[2], d_model, d_model)
    wo, bo = _lin_init(ks[3], d_model, d_model)
    self_attn = dict(wqkv=jnp.concatenate([wq, wk, wv], axis=1),
                     bqkv=jnp.concatenate([bq, bk, bv]),
                     wo=wo, bo=bo)

    wq2, bq2 = _lin_init(ks[4], d_model, d_model)
    wk2, bk2 = _lin_init(ks[5], d_model, d_model)
    wv2, bv2 = _lin_init(ks[6], d_model, d_model)
    wo2, bo2 = _lin_init(ks[7], d_model, d_model)
    cross_attn = dict(wq=wq2, bq=bq2,
                      wkv=jnp.concatenate([wk2, wv2], axis=1),
                      bkv=jnp.concatenate([bk2, bv2]),
                      wo=wo2, bo=bo2)

    w1, b1 = _lin_init(ks[8], d_model, ffn_hidden)
    w2, b2 = _lin_init(ks[9], ffn_hidden, d_model)
    ones = jnp.ones((d_model,), jnp.float32)
    zeros = jnp.zeros((d_model,), jnp.float32)
    return dict(self_attn=self_attn, cross_attn=cross_attn,
                ffn_w1=w1, ffn_b1=b1, ffn_w2=w2, ffn_b2=b2,
                ln1_g=ones, ln1_b=zeros,
                ln2_g=ones, ln2_b=zeros,
                ln3_g=ones, ln3_b=zeros)


# ------------------------------------------------------------------ main ----

if __name__ == "__main__":
    # small shapes consistent with the module
    B, S_tgt, S_src = 2, 8, 8
    d_model, ffn_hidden, n_head, n_layer = 32, 64, 4, 2

    key = jax.random.PRNGKey(0)
    k_tgt, k_enc, k_params = jax.random.split(key, 3)

    tgt = jax.random.normal(k_tgt, (B, S_tgt, d_model), jnp.float32)
    enc_src = jax.random.normal(k_enc, (B, S_src, d_model), jnp.float32)

    # causal target mask, full source mask (1 = keep, 0 = masked)
    tgt_mask = jnp.tril(jnp.ones((S_tgt, S_tgt), jnp.float32))
    tgt_mask = jnp.broadcast_to(tgt_mask, (B, 1, S_tgt, S_tgt))
    src_mask = jnp.ones((B, 1, S_tgt, S_src), jnp.float32)

    layer_keys = jax.random.split(k_params, n_layer)
    params = [init_layer_params(layer_keys[i], d_model, ffn_hidden)
              for i in range(n_layer)]

    # TODO(synk): dropout layers are identity here (inference-mode forward).
    out = decoder_forward(tgt, enc_src, tgt_mask, src_mask, params, n_head)
    out = jax.block_until_ready(out)
    assert out.shape == (B, S_tgt, d_model)
    print("KERNEL_OK")
</pallas_src>

<mosaic_0001>
module attributes {stable_mosaic.version = 11 : i64} {
  func.func @_linear_kernel(%arg0: i32, %arg1: i32, %arg2: i32, %arg3: memref<16x32xbf16, #tpu.memory_space<vmem>>, %arg4: memref<32x96xbf16, #tpu.memory_space<vmem>>, %arg5: memref<1x96xf32, #tpu.memory_space<vmem>>, %arg6: memref<16x96xbf16, #tpu.memory_space<vmem>>, %arg7: memref<16x96xf32, #tpu.memory_space<vmem>>) attributes {dimension_semantics = [#tpu.dimension_semantics<parallel>, #tpu.dimension_semantics<parallel>, #tpu.dimension_semantics<arbitrary>], iteration_bounds = array<i64: 1, 1, 1>, scalar_prefetch = 0 : i64, scratch_operands = 1 : i64, tpu.core_type = #tpu.core_type<tc>, window_params = [{transform_indices = @transform_0, window_bounds = array<i64: 16, 32>}, {transform_indices = @transform_1, window_bounds = array<i64: 32, 96>}, {transform_indices = @transform_2, window_bounds = array<i64: 1, 96>}, {transform_indices = @transform_3, window_bounds = array<i64: 16, 96>}]} {
    %c0_i32 = arith.constant 0 : i32
    %0 = arith.cmpi eq, %arg2, %c0_i32 : i32
    %1 = arith.extui %0 : i1 to i32
    %c0_i32_0 = arith.constant 0 : i32
    %2 = arith.cmpi ne, %1, %c0_i32_0 : i32
    scf.if %2 {
      %cst_10 = arith.constant 0.000000e+00 : f32
      %12 = vector.broadcast %cst_10 : f32 to vector<16x96xf32>
      %c0_11 = arith.constant 0 : index
      %c0_12 = arith.constant 0 : index
      %13 = vector.load %arg7[%c0_11, %c0_12] : memref<16x96xf32, #tpu.memory_space<vmem>>, vector<16x96xf32>
      tpu.vector_store %arg7[%c0_11, %c0_12], %12 {strides = array<i32>} : memref<16x96xf32, #tpu.memory_space<vmem>>, vector<16x96xf32>,
    } else {
    }
    %c0 = arith.constant 0 : index
    %c0_1 = arith.constant 0 : index
    %3 = vector.load %arg7[%c0, %c0_1] : memref<16x96xf32, #tpu.memory_space<vmem>>, vector<16x96xf32>
    %c0_2 = arith.constant 0 : index
    %c0_3 = arith.constant 0 : index
    %4 = vector.load %arg3[%c0_2, %c0_3] : memref<16x32xbf16, #tpu.memory_space<vmem>>, vector<16x32xbf16>
    %c0_4 = arith.constant 0 : index
    %c0_5 = arith.constant 0 : index
    %5 = vector.load %arg4[%c0_4, %c0_5] : memref<32x96xbf16, #tpu.memory_space<vmem>>, vector<32x96xbf16>
    %cst = arith.constant dense<0.000000e+00> : vector<16x96xf32>
    %6 = tpu.matmul %4, %5, %cst {dimension_numbers = #tpu.dot_dimension_numbers<[1], [0], [0], [1], [0, 0, 1, 1], [], []>} : vector<16x32xbf16>, vector<32x96xbf16>, vector<16x96xf32> -> vector<16x96xf32>
    %7 = arith.addf %3, %6 : vector<16x96xf32>
    %c0_6 = arith.constant 0 : index
    %c0_7 = arith.constant 0 : index
    %8 = vector.load %arg7[%c0_6, %c0_7] : memref<16x96xf32, #tpu.memory_space<vmem>>, vector<16x96xf32>
    tpu.vector_store %arg7[%c0_6, %c0_7], %7 {strides = array<i32>} : memref<16x96xf32, #tpu.memory_space<vmem>>, vector<16x96xf32>,
    %c0_i32_8 = arith.constant 0 : i32
    %9 = arith.cmpi eq, %arg2, %c0_i32_8 : i32
    %10 = arith.extui %9 : i1 to i32
    %c0_i32_9 = arith.constant 0 : i32
    %11 = arith.cmpi ne, %10, %c0_i32_9 : i32
    scf.if %11 {
      %c0_10 = arith.constant 0 : index
      %c0_11 = arith.constant 0 : index
      %12 = vector.load %arg7[%c0_10, %c0_11] : memref<16x96xf32, #tpu.memory_space<vmem>>, vector<16x96xf32>
      %c0_12 = arith.constant 0 : index
      %c0_13 = arith.constant 0 : index
      %13 = vector.load %arg5[%c0_12, %c0_13] : memref<1x96xf32, #tpu.memory_space<vmem>>, vector<1x96xf32>
      %14 = vector.broadcast %13 : vector<1x96xf32> to vector<16x96xf32>
      %15 = arith.addf %12, %14 : vector<16x96xf32>
      %16 = arith.truncf %15 : vector<16x96xf32> to vector<16x96xbf16>
      %c0_14 = arith.constant 0 : index
      %c0_15 = arith.constant 0 : index
      %17 = vector.load %arg6[%c0_14, %c0_15] : memref<16x96xbf16, #tpu.memory_space<vmem>>, vector<16x96xbf16>
      tpu.vector_store %arg6[%c0_14, %c0_15], %16 {strides = array<i32>} : memref<16x96xbf16, #tpu.memory_space<vmem>>, vector<16x96xbf16>,
    } else {
    }
    return
  }
  func.func @transform_0(%arg0: i32, %arg1: i32, %arg2: i32) -> (i32, i32) {
    %c0_i32 = arith.constant 0 : i32
    return %arg0, %arg2 : i32, i32
  }
  func.func @transform_1(%arg0: i32, %arg1: i32, %arg2: i32) -> (i32, i32) {
    %c0_i32 = arith.constant 0 : i32
    return %arg2, %arg1 : i32, i32
  }
  func.func @transform_2(%arg0: i32, %arg1: i32, %arg2: i32) -> (i32, i32) {
    %c0_i32 = arith.constant 0 : i32
    %c0_i32_0 = arith.constant 0 : i32
    return %c0_i32, %arg1 : i32, i32
  }
  func.func @transform_3(%arg0: i32, %arg1: i32, %arg2: i32) -> (i32, i32) {
    %c0_i32 = arith.constant 0 : i32
    return %arg0, %arg1 : i32, i32
  }
}

</mosaic_0001>

<llo_original>
// kernel: tpu_custom_call.1
$region0: #{tpu_custom_call.1}
  #allocation0 [shape = 'u32[]', space=smem, size = 0x4, offset = 0x4, fixed_abs, tag = 'smem constant byte address 0x4 - core index']
  #allocation1 [shape = 'u32[144,128]{1,0:T(1,128)}', space=vmem, size = 0x12000, scoped, tag = 'internal scratch']
  #allocation2 [shape = 'f32[16,96]{1,0:T(8,128)}', space=vmem, size = 0x2000, scoped, tag = 'scratch operand']
  %s0 = inlined_call_operand.hbm [shape: bf16[16,32], index: 0, kind: input, shape index: {}]
  %s1 = inlined_call_operand.hbm [shape: bf16[32,96], index: 1, kind: input, shape index: {}]
  %s2 = inlined_call_operand.vmem [shape: f32[1,96], index: 2, kind: input, shape index: {}]
  %s3 = inlined_call_operand.hbm [shape: bf16[16,96], index: 3, kind: output, shape index: {}]
  %s4 = sld [smem:[#allocation0]]
  $region38: #{tpu_custom_call.1} parent=0
    _
  %s6 = ssub.s32 1, %s4
  %s7 = scalar_select 0, %s6, %s4
  $region1: #{tpu_custom_call.1} parent=0
    #allocation3 [shape = 'u8[4096]{0}', space=vmem, size = 0x1000, scoped, tag = 'input window, operand 0, single buffered']
    #allocation4 [shape = 's32[1]{0}', space=sflag, size = 0x4, scoped, tag = 'scoped memory for tpu_custom_call.1']
    #allocation5 [shape = 's32[1]{0}', space=sflag, size = 0x4, scoped, tag = 'scoped memory for tpu_custom_call.1']
    #allocation6 [shape = 'u8[8192]{0}', space=vmem, size = 0x2000, scoped, tag = 'input window, operand 1, single buffered']
    #allocation7 [shape = 's32[1]{0}', space=sflag, size = 0x4, scoped, tag = 'scoped memory for tpu_custom_call.1']
    #allocation8 [shape = 'u8[4096]{0}', space=vmem, size = 0x1000, scoped, tag = 'output window, operand 0, single buffered']
    %8 = vsyncpa [#allocation4], 0
    %9 = vsyncpa [#allocation7], 0
    %10 = vsyncpa [#allocation5], 0
    // Predicated region
    $region2: #{tpu_custom_call.1} parent=1 // pred_check
      _
    $region3: #{tpu_custom_call.1} parent=1 // pred_check_branch
      %12 = sbr.rel (0) target = $region5
    $region4: #{tpu_custom_call.1} parent=1 // pred_region
      %s14 = ssub.s32 128, 128
      %15 = vsyncadd [#allocation4], %s14
      %s16 = sshll.u32 [#allocation3], 4
      %s17 = int_to_ptr.vmem [resolvable:$true] %s16
      %22 = dma.hbm_to_vmem [thread:$0]  %s0, 128, %s17, [#allocation4], 64, 64, 4
    $region5: #{tpu_custom_call.1} parent=1 // pred_fallthru
      _
    // Predicated region
    $region6: #{tpu_custom_call.1} parent=1 // pred_check
      _
    $region7: #{tpu_custom_call.1} parent=1 // pred_check_branch
      %24 = sbr.rel (0) target = $region9
    $region8: #{tpu_custom_call.1} parent=1 // pred_region
      %s26 = ssub.s32 256, 256
      %27 = vsyncadd [#allocation7], %s26
      %s28 = sshll.u32 [#allocation6], 4
      %s29 = int_to_ptr.vmem [resolvable:$true] %s28
      %34 = dma.hbm_to_vmem [thread:$0]  %s1, 256, %s29, [#allocation7], 64, 64, 4
    $region9: #{tpu_custom_call.1} parent=1 // pred_fallthru
      _
    // Predicated region
    $region10: #{tpu_custom_call.1} parent=1 // pred_check
      _
    $region11: #{tpu_custom_call.1} parent=1 // pred_check_branch
      %36 = sbr.rel (0) target = $region13
    $region12: #{tpu_custom_call.1} parent=1 // pred_region
      _
    $region13: #{tpu_custom_call.1} parent=1 // pred_fallthru
      _
    // Predicated region
    $region14: #{tpu_custom_call.1} parent=1 // pred_check
      _
    $region15: #{tpu_custom_call.1} parent=1 // pred_check_branch
      %38 = sbr.rel (0) target = $region17
    $region16: #{tpu_custom_call.1} parent=1 // pred_region
      %39 = dma.done [#allocation4], 128
    $region17: #{tpu_custom_call.1} parent=1 // pred_fallthru
      _
    // Predicated region
    $region18: #{tpu_custom_call.1} parent=1 // pred_check
      _
    $region19: #{tpu_custom_call.1} parent=1 // pred_check_branch
      %41 = sbr.rel (0) target = $region21
    $region20: #{tpu_custom_call.1} parent=1 // pred_region
      %42 = dma.done [#allocation7], 256
    $region21: #{tpu_custom_call.1} parent=1 // pred_fallthru
      _
    %p44 = scmp.eq.s32.totalorder 0, 0
    // Predicated region
    $region22: #{tpu_custom_call.1} parent=1 // pred_check
      %p45 = pneg %p44
    $region23: #{tpu_custom_call.1} parent=1 // pred_check_branch
      %47 = sbr.rel (%p45) target = $region25
    $region24: #{tpu_custom_call.1} parent=1 // pred_region
      %vm48 = vcmask 785408
      %49 = vst.msk [vmem:[#allocation2] sm:$0xff] %vm48, 0.0
      %50 = vst.msk [vmem:[#allocation2 + $0x8] sm:$0xff] %vm48, 0.0
    $region25: #{tpu_custom_call.1} parent=1 // pred_fallthru
      _
    %v51 = vld [vmem:[#allocation2] sm:$0xff]
    %v52 = vld [vmem:[#allocation2 + $0x8] sm:$0xff]
    %v53 = vld [vmem:[#allocation3] sm:$0xf]
    %v54 = vld [vmem:[#allocation3 + $0x4] sm:$0xf]
    %v55 = vld [vmem:[#allocation6] sm:$0xf]
    %v56 = vld [vmem:[#allocation6 + $0x4] sm:$0xf]
    %v57 = vld [vmem:[#allocation6 + $0x8] sm:$0xf]
    %v58 = vld [vmem:[#allocation6 + $0xc] sm:$0xf]
    %v61 = vunpack.c.l.b16 %v53
    %v62 = vunpack.c.l.b16 %v54
    %v63 = vpack.c.b16 %v62, %v61
    %v68 = vunpack.c.l.b16 %v55
    %v69 = vunpack.c.l.b16 %v56
    %v70 = vunpack.c.l.b16 %v57
    %v71 = vunpack.c.l.b16 %v58
    %v72 = vpack.c.b16 %v69, %v68
    %v73 = vpack.c.b16 %v71, %v70
    %vm76 = vcmask 261120
    %v78 = vsel %vm76, %v63, 0
    %80 = vmatprep.subr.bf16.mxu0 0
    %81 = vmatpush1.bf16.msra.mxu0 0
    %82 = vmatprep.subr.bf16.mxu0 0
    %83 = vmatpush1.bf16.msra.mxu0 0
    %84 = vmatprep.subr.bf16.mxu0 0
    %85 = vmatpush1.bf16.msra.mxu0 0
    %86 = vmatprep.subr.bf16.mxu0 0
    %87 = vmatpush1.bf16.msra.mxu0 0
    %88 = vmatprep.subr.bf16.mxu0 0
    %89 = vmatpush1.bf16.msra.mxu0 0
    %90 = vmatprep.subr.bf16.mxu0 0
    %91 = vmatpush1.bf16.msra.mxu0 0
    %92 = vmatprep.subr.bf16.mxu0 0
    %93 = vmatpush1.bf16.msra.mxu0 %v73
    %94 = vmatprep.subr.bf16.mxu0 0
    %95 = vmatpush1.bf16.msra.mxu0 %v72
    %96 = vmatprep.subr.bf16.mxu0 0
    %97 = vmatpush2.bf16.msra.mxu0 0
    %98 = vmatprep.subr.bf16.mxu0 0
    %99 = vmatpush2.bf16.msra.mxu0 0
    %100 = vmatprep.subr.bf16.mxu0 0
    %101 = vmatpush2.bf16.msra.mxu0 0
    %102 = vmatprep.subr.bf16.mxu0 0
    %103 = vmatpush2.bf16.msra.mxu0 0
    %104 = vmatprep.subr.bf16.mxu0 0
    %105 = vmatpush2.bf16.msra.mxu0 0
    %106 = vmatprep.subr.bf16.mxu0 0
    %107 = vmatpush2.bf16.msra.mxu0 0
    %108 = vmatprep.subr.bf16.mxu0 0
    %109 = vmatpush2.bf16.msra.mxu0 0
    %110 = vmatprep.subr.bf16.mxu0 0
    %111 = vmatpush2.bf16.msra.mxu0 0
    %112 = vmatprep.mubr.bf16.mxu0 0
    %113 = vmatmul.mubr.bf16.gmra.mxu0 %v78
    %v114 = vpop.f32.mrf.mxu0
    %v115 = vadd.f32 0.0, %v114
    %v116 = vpop.f32.mrf.mxu0
    %v117 = vpop.f32.mrf.mxu0
    %v118 = vadd.f32 0.0, %v117
    %v119 = vpop.f32.mrf.mxu0
    %120 = vdwg.mxu0
    %v121 = vadd.f32 %v51, %v115
    %v122 = vadd.f32 %v52, %v118
    %vm123 = vcmask 785408
    %124 = vst.msk [vmem:[#allocation2] sm:$0xff] %vm123, %v121
    %125 = vst.msk [vmem:[#allocation2 + $0x8] sm:$0xff] %vm123, %v122
    // Predicated region
    $region26: #{tpu_custom_call.1} parent=1 // pred_check
      %p126 = pneg %p44
    $region27: #{tpu_custom_call.1} parent=1 // pred_check_branch
      %128 = sbr.rel (%p126) target = $region29
    $region28: #{tpu_custom_call.1} parent=1 // pred_region
      %v129 = vld [vmem:[#allocation2] sm:$0xff]
      %v130 = vld [vmem:[#allocation2 + $0x8] sm:$0xff]
      %v131 = vld [vmem:[%s2] sm:$0x1]
      %v133 = vlaneseq
      %v134 = vshrl.u32 %v133, 7
      %v135 = vsub.s32 0, %v134
      %v136 = vrot.slane %v131, %v135
      %v138 = vadd.f32 %v129, %v136
      %v139 = vadd.f32 %v130, %v136
      %v140 = vpack.c.bf16 %v139, %v138
      %v142 = vunpack.c.l.b16 %v140
      %v143 = vunpack.c.h.b16 %v140
      %v144 = vpack.c.b16 %v142, %v142
      %v145 = vpack.c.b16 %v143, %v143
      %vm148 = vcmask 781312
      %149 = vst.msk [vmem:[#allocation8] sm:$0xf] %vm148, %v144
      %150 = vst.msk [vmem:[#allocation8 + $0x4] sm:$0xf] %vm148, %v145
    $region29: #{tpu_custom_call.1} parent=1 // pred_fallthru
      _
    // Predicated region
    $region30: #{tpu_custom_call.1} parent=1 // pred_check
      _
    $region31: #{tpu_custom_call.1} parent=1 // pred_check_branch
      %152 = sbr.rel (0) target = $region33
    $region32: #{tpu_custom_call.1} parent=1 // pred_region
      %s154 = ssub.s32 128, 128
      %155 = vsyncadd [#allocation5], %s154
      %s156 = sshll.u32 [#allocation8], 4
      %s157 = int_to_ptr.vmem [resolvable:$true] %s156
      %162 = dma.vmem_to_hbm [thread:$0]  %s157, 128, %s3, [#allocation5], 64, 64, 4
    $region33: #{tpu_custom_call.1} parent=1 // pred_fallthru
      _
    // Predicated region
    $region34: #{tpu_custom_call.1} parent=1 // pred_check
      _
    $region35: #{tpu_custom_call.1} parent=1 // pred_check_branch
      %164 = sbr.rel (0) target = $region37
    $region36: #{tpu_custom_call.1} parent=1 // pred_region
      %165 = dma.done [#allocation5], 128
    $region37: #{tpu_custom_call.1} parent=1 // pred_fallthru
      _
    %166 = vsyncpa [#allocation4], 1
    %167 = vsyncpa [#allocation7], 1
    %168 = vsyncpa [#allocation5], 1

</llo_original>
